<compile_context>
chip_gen: v7x
topology: tpu7x:2x2x1
jax: 0.10.0
libtpu: 0.0.40
codegen_flags: <defaults>
</compile_context>

<pallas_src>
import math

import jax
import jax.numpy as jnp
from jax import lax
from jax.experimental import pallas as pl
from jax.experimental.pallas import tpu as pltpu


def _round_up(x, m):
    return ((x + m - 1) // m) * m


def _lora_kernel(x_ref, w_ref, b_ref, a_ref, bb_ref, o_ref):
    """One (tm, tn) output tile of: out = x @ W^T + bias + (x @ A) @ (B * scaling).

    x_ref : (tm, K)   activation row tile (resident across the N grid axis)
    w_ref : (tn, K)   base weight tile in native PyTorch [out, in] layout
    b_ref : (1, tn)   bias tile
    a_ref : (K, r)    LoRA A (full, r is tiny)
    bb_ref: (r, tn)   LoRA B tile with alpha/rank scaling pre-folded
    """
    x = x_ref[...]

    # Base linear: contract the last dim of BOTH operands -> no host-side w.T.
    acc = lax.dot_general(
        x, w_ref[...],
        dimension_numbers=(((1,), (1,)), ((), ())),
        preferred_element_type=jnp.float32)                      # (tm, tn) f32

    # LoRA branch.
    # TODO(synk): training-mode dropout between A and B is omitted (eval / identity).
    xa = jnp.dot(x, a_ref[...], preferred_element_type=jnp.float32)     # (tm, r)
    acc += jnp.dot(xa.astype(bb_ref.dtype), bb_ref[...],
                   preferred_element_type=jnp.float32)                  # (tm, tn)

    o_ref[...] = (acc + b_ref[...]).astype(o_ref.dtype)


def lora_forward(x, w, bias, lora_A, lora_B, *, alpha=16, rank=8,
                 tm=256, tn=256, compute_dtype=None):
    """x: [..., in_features]; w: [out_features, in_features] (PyTorch layout).

    compute_dtype: optionally cast x / w / lora_A / lora_B (e.g. jnp.bfloat16)
    for the MXU streams; accumulation stays f32.
    """
    scaling = alpha / rank
    in_features = x.shape[-1]
    out_features = w.shape[0]
    lead = x.shape[:-1]
    out_dtype = x.dtype

    xf = x.reshape(-1, in_features)                   # [M, in]
    M = xf.shape[0]

    # Fold the LoRA scaling into B once (O(rank * out) preprocessing).
    bb = lora_B * jnp.asarray(scaling, dtype=lora_B.dtype)
    b2 = bias.reshape(1, out_features).astype(jnp.float32)

    if compute_dtype is not None:
        xf = xf.astype(compute_dtype)
        w = w.astype(compute_dtype)
        lora_A = lora_A.astype(compute_dtype)
        bb = bb.astype(compute_dtype)

    # Tile sizes: sublane-aligned row tile, lane-dense (128-multiple) col tile.
    sub = 16 if xf.dtype == jnp.bfloat16 else 8
    tm_eff = min(tm, _round_up(M, sub))
    tn_eff = min(tn, _round_up(out_features, 128))
    Mp = _round_up(M, tm_eff)
    Np = _round_up(out_features, tn_eff)

    if Mp != M:
        xf = jnp.pad(xf, ((0, Mp - M), (0, 0)))
    if Np != out_features:
        w = jnp.pad(w, ((0, Np - out_features), (0, 0)))
        b2 = jnp.pad(b2, ((0, 0), (0, Np - out_features)))
        bb = jnp.pad(bb, ((0, 0), (0, Np - out_features)))

    grid = (Mp // tm_eff, Np // tn_eff)

    # TODO(synk): if in_features grows beyond ~4096 (v7x's 64 MiB VMEM), add a
    # K reduction grid axis ("arbitrary", last) with an f32 VMEM accumulator.

    itemsize = lambda a: jnp.dtype(a.dtype).itemsize
    cost = pl.CostEstimate(
        flops=2 * Mp * (in_features * Np + in_features * rank + rank * Np),
        transcendentals=0,
        bytes_accessed=(xf.size * itemsize(xf) + w.size * itemsize(w)
                        + bb.size * itemsize(bb) + lora_A.size * itemsize(lora_A)
                        + Mp * Np * jnp.dtype(out_dtype).itemsize))

    out = pl.pallas_call(
        _lora_kernel,
        out_shape=jax.ShapeDtypeStruct((Mp, Np), out_dtype),
        grid_spec=pltpu.PrefetchScalarGridSpec(
            num_scalar_prefetch=0,
            grid=grid,
            in_specs=[
                pl.BlockSpec((tm_eff, in_features), lambda i, j: (i, 0)),   # x (N-resident)
                pl.BlockSpec((tn_eff, in_features), lambda i, j: (j, 0)),   # W [out, in]
                pl.BlockSpec((1, tn_eff), lambda i, j: (0, j)),             # bias
                pl.BlockSpec((in_features, rank), lambda i, j: (0, 0)),     # lora_A
                pl.BlockSpec((rank, tn_eff), lambda i, j: (0, j)),          # lora_B * scale
            ],
            out_specs=pl.BlockSpec((tm_eff, tn_eff), lambda i, j: (i, j)),
        ),
        compiler_params=pltpu.CompilerParams(
            dimension_semantics=("parallel", "parallel"),
            vmem_limit_bytes=64 * 1024 * 1024),
        cost_estimate=cost,
    )(xf, w, b2, lora_A, bb)

    return out[:M, :out_features].reshape(*lead, out_features)


def lora_reference(x, w, bias, lora_A, lora_B, *, alpha=16, rank=8):
    scaling = alpha / rank
    base = x @ w.T + bias
    lora = (x @ lora_A) @ lora_B
    return base + lora * scaling


if __name__ == "__main__":
    # Small deterministic setup consistent with the module:
    #   batch=2, seq=8, in_features=32, out_features=32, rank=8, alpha=16.
    batch, seq, in_features, out_features, rank, alpha = 2, 8, 32, 32, 8, 16

    key = jax.random.PRNGKey(0)
    kx, kw, kb, ka, kbb = jax.random.split(key, 5)

    x = jax.random.normal(kx, (batch, seq, in_features), dtype=jnp.float32)

    # Base nn.Linear params (PyTorch layout: weight [out, in], bias [out]).
    lim_w = 1.0 / math.sqrt(in_features)
    w = jax.random.uniform(kw, (out_features, in_features),
                           minval=-lim_w, maxval=lim_w, dtype=jnp.float32)
    bias = jax.random.uniform(kb, (out_features,),
                              minval=-lim_w, maxval=lim_w, dtype=jnp.float32)

    # LoRA params. PyTorch inits A with kaiming_uniform(a=sqrt(5)) and B with
    # zeros; use deterministic random values for B too so the LoRA branch is
    # actually exercised by the kernel.
    bound_a = math.sqrt(6.0 / (1 + 5) / in_features)
    lora_A = jax.random.uniform(ka, (in_features, rank),
                                minval=-bound_a, maxval=bound_a, dtype=jnp.float32)
    lora_B = 0.02 * jax.random.normal(kbb, (rank, out_features), dtype=jnp.float32)

    out = lora_forward(x, w, bias, lora_A, lora_B, alpha=alpha, rank=rank)
    out = jax.block_until_ready(out)

    ref = lora_reference(x, w, bias, lora_A, lora_B, alpha=alpha, rank=rank)
    assert out.shape == (batch, seq, out_features)
    assert jnp.allclose(out, ref, atol=1e-4, rtol=1e-4), "mismatch vs reference"

    print("KERNEL_OK")
</pallas_src>

<mosaic_0001>
module attributes {stable_mosaic.version = 11 : i64} {
  func.func @_lora_kernel(%arg0: i32, %arg1: i32, %arg2: memref<16x32xf32, #tpu.memory_space<vmem>>, %arg3: memref<128x32xf32, #tpu.memory_space<vmem>>, %arg4: memref<1x128xf32, #tpu.memory_space<vmem>>, %arg5: memref<32x8xf32, #tpu.memory_space<vmem>>, %arg6: memref<8x128xf32, #tpu.memory_space<vmem>>, %arg7: memref<16x128xf32, #tpu.memory_space<vmem>>) attributes {dimension_semantics = [#tpu.dimension_semantics<parallel>, #tpu.dimension_semantics<parallel>], iteration_bounds = array<i64: 1, 1>, scalar_prefetch = 0 : i64, scratch_operands = 0 : i64, tpu.core_type = #tpu.core_type<tc>, window_params = [{transform_indices = @transform_0, window_bounds = array<i64: 16, 32>}, {transform_indices = @transform_1, window_bounds = array<i64: 128, 32>}, {transform_indices = @transform_2, window_bounds = array<i64: 1, 128>}, {pipeline_mode = #tpu.pipeline_mode<synchronous>, transform_indices = @transform_3, window_bounds = array<i64: 32, 8>}, {transform_indices = @transform_4, window_bounds = array<i64: 8, 128>}, {transform_indices = @transform_5, window_bounds = array<i64: 16, 128>}]} {
    %c0 = arith.constant 0 : index
    %c0_0 = arith.constant 0 : index
    %0 = vector.load %arg2[%c0, %c0_0] : memref<16x32xf32, #tpu.memory_space<vmem>>, vector<16x32xf32>
    %c0_1 = arith.constant 0 : index
    %c0_2 = arith.constant 0 : index
    %1 = vector.load %arg3[%c0_1, %c0_2] : memref<128x32xf32, #tpu.memory_space<vmem>>, vector<128x32xf32>
    %cst = arith.constant dense<0.000000e+00> : vector<16x128xf32>
    %2 = tpu.matmul %0, %1, %cst {dimension_numbers = #tpu.dot_dimension_numbers<[1], [1], [0], [0], [0, 0, 1, 0], [], []>} : vector<16x32xf32>, vector<128x32xf32>, vector<16x128xf32> -> vector<16x128xf32>
    %c0_3 = arith.constant 0 : index
    %c0_4 = arith.constant 0 : index
    %3 = vector.load %arg5[%c0_3, %c0_4] : memref<32x8xf32, #tpu.memory_space<vmem>>, vector<32x8xf32>
    %cst_5 = arith.constant dense<0.000000e+00> : vector<16x8xf32>
    %4 = tpu.matmul %0, %3, %cst_5 {dimension_numbers = #tpu.dot_dimension_numbers<[1], [0], [0], [1], [0, 0, 1, 1], [], []>} : vector<16x32xf32>, vector<32x8xf32>, vector<16x8xf32> -> vector<16x8xf32>
    %c0_6 = arith.constant 0 : index
    %c0_7 = arith.constant 0 : index
    %5 = vector.load %arg6[%c0_6, %c0_7] : memref<8x128xf32, #tpu.memory_space<vmem>>, vector<8x128xf32>
    %cst_8 = arith.constant dense<0.000000e+00> : vector<16x128xf32>
    %6 = tpu.matmul %4, %5, %cst_8 {dimension_numbers = #tpu.dot_dimension_numbers<[1], [0], [0], [1], [0, 0, 1, 1], [], []>} : vector<16x8xf32>, vector<8x128xf32>, vector<16x128xf32> -> vector<16x128xf32>
    %7 = arith.addf %2, %6 : vector<16x128xf32>
    %c0_9 = arith.constant 0 : index
    %c0_10 = arith.constant 0 : index
    %8 = vector.load %arg4[%c0_9, %c0_10] : memref<1x128xf32, #tpu.memory_space<vmem>>, vector<1x128xf32>
    %9 = vector.broadcast %8 : vector<1x128xf32> to vector<16x128xf32>
    %10 = arith.addf %7, %9 : vector<16x128xf32>
    %c0_11 = arith.constant 0 : index
    %c0_12 = arith.constant 0 : index
    %11 = vector.load %arg7[%c0_11, %c0_12] : memref<16x128xf32, #tpu.memory_space<vmem>>, vector<16x128xf32>
    tpu.vector_store %arg7[%c0_11, %c0_12], %10 {strides = array<i32>} : memref<16x128xf32, #tpu.memory_space<vmem>>, vector<16x128xf32>,
    return
  }
  func.func @transform_0(%arg0: i32, %arg1: i32) -> (i32, i32) {
    %c0_i32 = arith.constant 0 : i32
    %c0_i32_0 = arith.constant 0 : i32
    return %arg0, %c0_i32 : i32, i32
  }
  func.func @transform_1(%arg0: i32, %arg1: i32) -> (i32, i32) {
    %c0_i32 = arith.constant 0 : i32
    %c0_i32_0 = arith.constant 0 : i32
    return %arg1, %c0_i32 : i32, i32
  }
  func.func @transform_2(%arg0: i32, %arg1: i32) -> (i32, i32) {
    %c0_i32 = arith.constant 0 : i32
    %c0_i32_0 = arith.constant 0 : i32
    return %c0_i32, %arg1 : i32, i32
  }
  func.func @transform_3(%arg0: i32, %arg1: i32) -> (i32, i32) {
    %c0_i32 = arith.constant 0 : i32
    %c0_i32_0 = arith.constant 0 : i32
    %c0_i32_1 = arith.constant 0 : i32
    return %c0_i32, %c0_i32_0 : i32, i32
  }
  func.func @transform_4(%arg0: i32, %arg1: i32) -> (i32, i32) {
    %c0_i32 = arith.constant 0 : i32
    %c0_i32_0 = arith.constant 0 : i32
    return %c0_i32, %arg1 : i32, i32
  }
  func.func @transform_5(%arg0: i32, %arg1: i32) -> (i32, i32) {
    %c0_i32 = arith.constant 0 : i32
    return %arg0, %arg1 : i32, i32
  }
}

</mosaic_0001>

<llo_original>
// kernel: tpu_custom_call.1
$region0: #{tpu_custom_call.1}
  #allocation0 [shape = 'u32[]', space=smem, size = 0x4, offset = 0x4, fixed_abs, tag = 'smem constant byte address 0x4 - core index']
  #allocation1 [shape = 'u32[144,128]{1,0:T(1,128)}', space=vmem, size = 0x12000, scoped, tag = 'internal scratch']
  %s0 = inlined_call_operand.hbm [shape: f32[16,32], index: 0, kind: input, shape index: {}]
  %s1 = inlined_call_operand.hbm [shape: f32[128,32], index: 1, kind: input, shape index: {}]
  %s2 = inlined_call_operand.hbm [shape: f32[1,128], index: 2, kind: input, shape index: {}]
  %s3 = inlined_call_operand.hbm [shape: f32[32,8], index: 3, kind: input, shape index: {}]
  %s4 = inlined_call_operand.hbm [shape: f32[8,128], index: 4, kind: input, shape index: {}]
  %s5 = inlined_call_operand.hbm [shape: f32[16,128], index: 5, kind: output, shape index: {}]
  %s6 = sld [smem:[#allocation0]]
  $region50: #{tpu_custom_call.1} parent=0
    _
  %s8 = ssub.s32 1, %s6
  %s9 = scalar_select 0, %s8, %s6
  $region1: #{tpu_custom_call.1} parent=0
    #allocation2 [shape = 'u8[8192]{0}', space=vmem, size = 0x2000, scoped, tag = 'input window, operand 0, single buffered']
    #allocation3 [shape = 's32[1]{0}', space=sflag, size = 0x4, scoped, tag = 'scoped memory for tpu_custom_call.1']
    #allocation4 [shape = 's32[1]{0}', space=sflag, size = 0x4, scoped, tag = 'scoped memory for tpu_custom_call.1']
    #allocation5 [shape = 'u8[65536]{0}', space=vmem, size = 0x10000, scoped, tag = 'input window, operand 1, single buffered']
    #allocation6 [shape = 's32[1]{0}', space=sflag, size = 0x4, scoped, tag = 'scoped memory for tpu_custom_call.1']
    #allocation7 [shape = 'u8[512]{0}', space=vmem, size = 0x400, scoped, tag = 'input window, operand 2, single buffered']
    #allocation8 [shape = 'u8[16384]{0}', space=vmem, size = 0x4000, scoped, tag = 'input window, operand 3, single buffered']
    #allocation9 [shape = 's32[1]{0}', space=sflag, size = 0x4, scoped, tag = 'scoped memory for tpu_custom_call.1']
    #allocation10 [shape = 'u8[4096]{0}', space=vmem, size = 0x1000, scoped, tag = 'input window, operand 4, single buffered']
    #allocation11 [shape = 'u8[8192]{0}', space=vmem, size = 0x2000, scoped, tag = 'output window, operand 0, single buffered']
    %10 = vsyncpa [#allocation3], 0
    %11 = vsyncpa [#allocation6], 0
    %12 = vsyncpa [#allocation9], 0
    %13 = vsyncpa [#allocation4], 0
    // Predicated region
    $region2: #{tpu_custom_call.1} parent=1 // pred_check
      _
    $region3: #{tpu_custom_call.1} parent=1 // pred_check_branch
      %15 = sbr.rel (0) target = $region5
    $region4: #{tpu_custom_call.1} parent=1 // pred_region
      %s17 = ssub.s32 256, 256
      %18 = vsyncadd [#allocation3], %s17
      %s19 = sshll.u32 [#allocation2], 4
      %s20 = int_to_ptr.vmem [resolvable:$true] %s19
      %25 = dma.hbm_to_vmem [thread:$0]  %s0, 256, %s20, [#allocation3], 128, 128, 8
    $region5: #{tpu_custom_call.1} parent=1 // pred_fallthru
      _
    // Predicated region
    $region6: #{tpu_custom_call.1} parent=1 // pred_check
      _
    $region7: #{tpu_custom_call.1} parent=1 // pred_check_branch
      %27 = sbr.rel (0) target = $region9
    $region8: #{tpu_custom_call.1} parent=1 // pred_region
      %s29 = ssub.s32 2048, 2048
      %30 = vsyncadd [#allocation6], %s29
      %s31 = sshll.u32 [#allocation5], 4
      %s32 = int_to_ptr.vmem [resolvable:$true] %s31
      %37 = dma.hbm_to_vmem [thread:$0]  %s1, 2048, %s32, [#allocation6], 128, 128, 8
    $region9: #{tpu_custom_call.1} parent=1 // pred_fallthru
      _
    // Predicated region
    $region10: #{tpu_custom_call.1} parent=1 // pred_check
      _
    $region11: #{tpu_custom_call.1} parent=1 // pred_check_branch
      %39 = sbr.rel (0) target = $region13
    $region12: #{tpu_custom_call.1} parent=1 // pred_region
      %s41 = ssub.s32 16, 16
      %42 = vsyncadd [#allocation6], %s41
      %s44 = sshll.u32 [#allocation7], 4
      %s45 = int_to_ptr.vmem [resolvable:$true] %s44
      %47 = dma.hbm_to_vmem [thread:$0]  %s2, 16, %s45, [#allocation6]
    $region13: #{tpu_custom_call.1} parent=1 // pred_fallthru
      _
    // Predicated region
    $region14: #{tpu_custom_call.1} parent=1 // pred_check
      _
    $region15: #{tpu_custom_call.1} parent=1 // pred_check_branch
      %49 = sbr.rel (0) target = $region17
    $region16: #{tpu_custom_call.1} parent=1 // pred_region
      %s51 = ssub.s32 512, 512
      %52 = vsyncadd [#allocation9], %s51
      %s53 = sshll.u32 [#allocation8], 4
      %s54 = int_to_ptr.vmem [resolvable:$true] %s53
      %59 = dma.hbm_to_vmem [thread:$0]  %s3, 512, %s54, [#allocation9], 128, 128, 8
    $region17: #{tpu_custom_call.1} parent=1 // pred_fallthru
      _
    // Predicated region
    $region18: #{tpu_custom_call.1} parent=1 // pred_check
      _
    $region19: #{tpu_custom_call.1} parent=1 // pred_check_branch
      %61 = sbr.rel (0) target = $region21
    $region20: #{tpu_custom_call.1} parent=1 // pred_region
      %s63 = ssub.s32 128, 128
      %64 = vsyncadd [#allocation9], %s63
      %s66 = sshll.u32 [#allocation10], 4
      %s67 = int_to_ptr.vmem [resolvable:$true] %s66
      %69 = dma.hbm_to_vmem [thread:$0]  %s4, 128, %s67, [#allocation9]
    $region21: #{tpu_custom_call.1} parent=1 // pred_fallthru
      _
    // Predicated region
    $region22: #{tpu_custom_call.1} parent=1 // pred_check
      _
    $region23: #{tpu_custom_call.1} parent=1 // pred_check_branch
      %71 = sbr.rel (0) target = $region25
    $region24: #{tpu_custom_call.1} parent=1 // pred_region
      %72 = dma.done [#allocation3], 256
    $region25: #{tpu_custom_call.1} parent=1 // pred_fallthru
      _
    // Predicated region
    $region26: #{tpu_custom_call.1} parent=1 // pred_check
      _
    $region27: #{tpu_custom_call.1} parent=1 // pred_check_branch
      %74 = sbr.rel (0) target = $region29
    $region28: #{tpu_custom_call.1} parent=1 // pred_region
      %75 = dma.done [#allocation6], 2048
    $region29: #{tpu_custom_call.1} parent=1 // pred_fallthru
      _
    // Predicated region
    $region30: #{tpu_custom_call.1} parent=1 // pred_check
      _
    $region31: #{tpu_custom_call.1} parent=1 // pred_check_branch
      %77 = sbr.rel (0) target = $region33
    $region32: #{tpu_custom_call.1} parent=1 // pred_region
      %78 = dma.done [#allocation6], 16
    $region33: #{tpu_custom_call.1} parent=1 // pred_fallthru
      _
    // Predicated region
    $region34: #{tpu_custom_call.1} parent=1 // pred_check
      _
    $region35: #{tpu_custom_call.1} parent=1 // pred_check_branch
      %80 = sbr.rel (0) target = $region37
    $region36: #{tpu_custom_call.1} parent=1 // pred_region
      %81 = dma.done [#allocation9], 512
    $region37: #{tpu_custom_call.1} parent=1 // pred_fallthru
      _
    // Predicated region
    $region38: #{tpu_custom_call.1} parent=1 // pred_check
      _
    $region39: #{tpu_custom_call.1} parent=1 // pred_check_branch
      %83 = sbr.rel (0) target = $region41
    $region40: #{tpu_custom_call.1} parent=1 // pred_region
      %84 = dma.done [#allocation9], 128
    $region41: #{tpu_custom_call.1} parent=1 // pred_fallthru
      _
    %v85 = vld [vmem:[#allocation2] sm:$0xff]
    %v86 = vld [vmem:[#allocation2 + $0x8] sm:$0xff]
    %v87 = vld [vmem:[#allocation5] sm:$0xff]
    %v88 = vld [vmem:[#allocation5 + $0x8] sm:$0xff]
    %v89 = vld [vmem:[#allocation5 + $0x10] sm:$0xff]
    %v90 = vld [vmem:[#allocation5 + $0x18] sm:$0xff]
    %v91 = vld [vmem:[#allocation5 + $0x20] sm:$0xff]
    %v92 = vld [vmem:[#allocation5 + $0x28] sm:$0xff]
    %v93 = vld [vmem:[#allocation5 + $0x30] sm:$0xff]
    %v94 = vld [vmem:[#allocation5 + $0x38] sm:$0xff]
    %v95 = vld [vmem:[#allocation5 + $0x40] sm:$0xff]
    %v96 = vld [vmem:[#allocation5 + $0x48] sm:$0xff]
    %v97 = vld [vmem:[#allocation5 + $0x50] sm:$0xff]
    %v98 = vld [vmem:[#allocation5 + $0x58] sm:$0xff]
    %v99 = vld [vmem:[#allocation5 + $0x60] sm:$0xff]
    %v100 = vld [vmem:[#allocation5 + $0x68] sm:$0xff]
    %v101 = vld [vmem:[#allocation5 + $0x70] sm:$0xff]
    %v102 = vld [vmem:[#allocation5 + $0x78] sm:$0xff]
    %v103 = vld [vmem:[#allocation8] sm:$0xff]
    %v104 = vld [vmem:[#allocation8 + $0x8] sm:$0xff]
    %v105 = vld [vmem:[#allocation8 + $0x10] sm:$0xff]
    %v106 = vld [vmem:[#allocation8 + $0x18] sm:$0xff]
    %vm107 = vcmask 261120
    %v109 = vsel %vm107, %v85, 0
    %v112 = vsel %vm107, %v86, 0
    %114 = vmatprep.subr.mxu0 0.0
    %115 = vmatpush1.msra.mxu0 %v103
    %116 = vmatprep.subr.mxu0 0.0
    %117 = vmatpush1.msra.mxu0 %v104
    %118 = vmatprep.subr.mxu0 0.0
    %119 = vmatpush1.msra.mxu0 %v105
    %120 = vmatprep.subr.mxu0 0.0
    %121 = vmatpush1.msra.mxu0 %v106
    %122 = vmatprep.subr.mxu0 0.0
    %123 = vmatpush1.msra.mxu0 0.0
    %124 = vmatprep.subr.mxu0 0.0
    %125 = vmatpush1.msra.mxu0 0.0
    %126 = vmatprep.subr.mxu0 0.0
    %127 = vmatpush1.msra.mxu0 0.0
    %128 = vmatprep.subr.mxu0 0.0
    %129 = vmatpush1.msra.mxu0 0.0
    %130 = vmatprep.subr.mxu0 0.0
    %131 = vmatpush1.msra.mxu0 0.0
    %132 = vmatprep.subr.mxu0 0.0
    %133 = vmatpush1.msra.mxu0 0.0
    %134 = vmatprep.subr.mxu0 0.0
    %135 = vmatpush1.msra.mxu0 0.0
    %136 = vmatprep.subr.mxu0 0.0
    %137 = vmatpush1.msra.mxu0 0.0
    %138 = vmatprep.subr.mxu0 0.0
    %139 = vmatpush1.msra.mxu0 0.0
    %140 = vmatprep.subr.mxu0 0.0
    %141 = vmatpush1.msra.mxu0 0.0
    %142 = vmatprep.subr.mxu0 0.0
    %143 = vmatpush1.msra.mxu0 0.0
    %144 = vmatprep.subr.mxu0 0.0
    %145 = vmatpush1.msra.mxu0 0.0
    %146 = vmatprep.subr.mxu0 0.0
    %147 = vmatpush1.msra.mxu0 0.0
    %148 = vmatprep.subr.mxu0 0.0
    %149 = vmatpush1.msra.mxu0 0.0
    %150 = vmatprep.subr.mxu0 0.0
    %151 = vmatpush1.msra.mxu0 0.0
    %152 = vmatprep.subr.mxu0 0.0
    %153 = vmatpush1.msra.mxu0 0.0
    %154 = vmatprep.subr.mxu0 0.0
    %155 = vmatpush1.msra.mxu0 0.0
    %156 = vmatprep.subr.mxu0 0.0
    %157 = vmatpush1.msra.mxu0 0.0
    %158 = vmatprep.subr.mxu0 0.0
    %159 = vmatpush1.msra.mxu0 0.0
    %160 = vmatprep.subr.mxu0 0.0
    %161 = vmatpush1.msra.mxu0 0.0
    %162 = vmatprep.subr.mxu0 0.0
    %163 = vmatpush1.msra.mxu0 0.0
    %164 = vmatprep.subr.mxu0 0.0
    %165 = vmatpush1.msra.mxu0 0.0
    %166 = vmatprep.subr.mxu0 0.0
    %167 = vmatpush1.msra.mxu0 0.0
    %168 = vmatprep.subr.mxu0 0.0
    %169 = vmatpush1.msra.mxu0 0.0
    %170 = vmatprep.subr.mxu0 0.0
    %171 = vmatpush1.msra.mxu0 0.0
    %172 = vmatprep.subr.mxu0 0.0
    %173 = vmatpush1.msra.mxu0 0.0
    %174 = vmatprep.subr.mxu0 0.0
    %175 = vmatpush1.msra.mxu0 0.0
    %176 = vmatprep.subr.mxu0 0.0
    %177 = vmatpush1.msra.mxu0 0.0
    %178 = vmatprep.mubr.f32.mxu0 0.0
    %179 = vmatmul.mubr.f32.gmra.mrb[0].mxu0 %v109
    %v180 = vpop.f32.mrb[0].mxu0
    %v181 = vadd.f32 0.0, %v180
    %v182 = vpop.f32.mrb[0].mxu0
    %183 = vmatprep.mubr.f32.mxu0 0.0
    %184 = vmatmul.mubr.f32.gmra.mrb[0].mxu0 %v112
    %v185 = vpop.f32.mrb[0].mxu0
    %v186 = vadd.f32 0.0, %v185
    %v187 = vpop.f32.mrb[0].mxu0
    %188 = vdwg.mxu0
    %v189 = vld [vmem:[#allocation10] sm:$0xff]
    %vm190 = vcmask 64512
    %v192 = vsel %vm190, %v181, 0
    %v195 = vsel %vm190, %v186, 0
    %197 = vmatprep.subr.mxu0 0.0
    %198 = vmatpush1.msra.mxu0 %v189
    %199 = vmatprep.subr.mxu0 0.0
    %200 = vmatpush1.msra.mxu0 0.0
    %201 = vmatprep.subr.mxu0 0.0
    %202 = vmatpush1.msra.mxu0 0.0
    %203 = vmatprep.subr.mxu0 0.0
    %204 = vmatpush1.msra.mxu0 0.0
    %205 = vmatprep.subr.mxu0 0.0
    %206 = vmatpush1.msra.mxu0 0.0
    %207 = vmatprep.subr.mxu0 0.0
    %208 = vmatpush1.msra.mxu0 0.0
    %209 = vmatprep.subr.mxu0 0.0
    %210 = vmatpush1.msra.mxu0 0.0
    %211 = vmatprep.subr.mxu0 0.0
    %212 = vmatpush1.msra.mxu0 0.0
    %213 = vmatprep.subr.mxu0 0.0
    %214 = vmatpush1.msra.mxu0 0.0
    %215 = vmatprep.subr.mxu0 0.0
    %216 = vmatpush1.msra.mxu0 0.0
    %217 = vmatprep.subr.mxu0 0.0
    %218 = vmatpush1.msra.mxu0 0.0
    %219 = vmatprep.subr.mxu0 0.0
    %220 = vmatpush1.msra.mxu0 0.0
    %221 = vmatprep.subr.mxu0 0.0
    %222 = vmatpush1.msra.mxu0 0.0
    %223 = vmatprep.subr.mxu0 0.0
    %224 = vmatpush1.msra.mxu0 0.0
    %225 = vmatprep.subr.mxu0 0.0
    %226 = vmatpush1.msra.mxu0 0.0
    %227 = vmatprep.subr.mxu0 0.0
    %228 = vmatpush1.msra.mxu0 0.0
    %229 = vmatprep.subr.mxu0 0.0
    %230 = vmatpush1.msra.mxu0 0.0
    %231 = vmatprep.subr.mxu0 0.0
    %232 = vmatpush1.msra.mxu0 0.0
    %233 = vmatprep.subr.mxu0 0.0
    %234 = vmatpush1.msra.mxu0 0.0
    %235 = vmatprep.subr.mxu0 0.0
    %236 = vmatpush1.msra.mxu0 0.0
    %237 = vmatprep.subr.mxu0 0.0
    %238 = vmatpush1.msra.mxu0 0.0
    %239 = vmatprep.subr.mxu0 0.0
    %240 = vmatpush1.msra.mxu0 0.0
    %241 = vmatprep.subr.mxu0 0.0
    %242 = vmatpush1.msra.mxu0 0.0
    %243 = vmatprep.subr.mxu0 0.0
    %244 = vmatpush1.msra.mxu0 0.0
    %245 = vmatprep.subr.mxu0 0.0
    %246 = vmatpush1.msra.mxu0 0.0
    %247 = vmatprep.subr.mxu0 0.0
    %248 = vmatpush1.msra.mxu0 0.0
    %249 = vmatprep.subr.mxu0 0.0
    %250 = vmatpush1.msra.mxu0 0.0
    %251 = vmatprep.subr.mxu0 0.0
    %252 = vmatpush1.msra.mxu0 0.0
    %253 = vmatprep.subr.mxu0 0.0
    %254 = vmatpush1.msra.mxu0 0.0
    %255 = vmatprep.subr.mxu0 0.0
    %256 = vmatpush1.msra.mxu0 0.0
    %257 = vmatprep.subr.mxu0 0.0
    %258 = vmatpush1.msra.mxu0 0.0
    %259 = vmatprep.subr.mxu0 0.0
    %260 = vmatpush1.msra.mxu0 0.0
    %261 = vmatprep.mubr.f32.mxu0 0.0
    %262 = vmatmul.mubr.f32.gmra.mrb[0].mxu0 %v192
    %v263 = vpop.f32.mrb[0].mxu0
    %v264 = vadd.f32 0.0, %v263
    %v265 = vpop.f32.mrb[0].mxu0
    %266 = vmatprep.mubr.f32.mxu0 0.0
    %267 = vmatmul.mubr.f32.gmra.mrb[0].mxu0 %v195
    %v268 = vpop.f32.mrb[0].mxu0
    %v269 = vadd.f32 0.0, %v268
    %v270 = vpop.f32.mrb[0].mxu0
    %271 = vdwg.mxu0
    %v273 = vsel %vm107, %v87, 0
    %v276 = vsel %vm107, %v88, 0
    %v279 = vsel %vm107, %v89, 0
    %v282 = vsel %vm107, %v90, 0
    %v285 = vsel %vm107, %v91, 0
    %v288 = vsel %vm107, %v92, 0
    %v291 = vsel %vm107, %v93, 0
    %v294 = vsel %vm107, %v94, 0
    %v297 = vsel %vm107, %v95, 0
    %v300 = vsel %vm107, %v96, 0
    %v303 = vsel %vm107, %v97, 0
    %v306 = vsel %vm107, %v98, 0
    %v309 = vsel %vm107, %v99, 0
    %v312 = vsel %vm107, %v100, 0
    %v315 = vsel %vm107, %v101, 0
    %v318 = vsel %vm107, %v102, 0
    %320 = vmatprep.subr.mxu0 0.0
    %321 = vmatpush1.xpose.msra.mxu0 %v273
    %322 = vmatprep.subr.mxu0 0.0
    %323 = vmatpush1.xpose.msra.mxu0 %v276
    %324 = vmatprep.subr.mxu0 0.0
    %325 = vmatpush1.xpose.msra.mxu0 %v279
    %326 = vmatprep.subr.mxu0 0.0
    %327 = vmatpush1.xpose.msra.mxu0 %v282
    %328 = vmatprep.subr.mxu0 0.0
    %329 = vmatpush1.xpose.msra.mxu0 %v285
    %330 = vmatprep.subr.mxu0 0.0
    %331 = vmatpush1.xpose.msra.mxu0 %v288
    %332 = vmatprep.subr.mxu0 0.0
    %333 = vmatpush1.xpose.msra.mxu0 %v291
    %334 = vmatprep.subr.mxu0 0.0
    %335 = vmatpush1.xpose.msra.mxu0 %v294
    %336 = vmatprep.subr.mxu0 0.0
    %337 = vmatpush1.xpose.msra.mxu0 %v297
    %338 = vmatprep.subr.mxu0 0.0
    %339 = vmatpush1.xpose.msra.mxu0 %v300
    %340 = vmatprep.subr.mxu0 0.0
    %341 = vmatpush1.xpose.msra.mxu0 %v303
    %342 = vmatprep.subr.mxu0 0.0
    %343 = vmatpush1.xpose.msra.mxu0 %v306
    %344 = vmatprep.subr.mxu0 0.0
    %345 = vmatpush1.xpose.msra.mxu0 %v309
    %346 = vmatprep.subr.mxu0 0.0
    %347 = vmatpush1.xpose.msra.mxu0 %v312
    %348 = vmatprep.subr.mxu0 0.0
    %349 = vmatpush1.xpose.msra.mxu0 %v315
    %350 = vmatprep.subr.mxu0 0.0
    %351 = vmatpush1.xpose.msra.mxu0 %v318
    %352 = vmatprep.subr.mxu0 0.0
    %353 = vmatpush1.xpose.msra.mxu0 0.0
    %354 = vmatprep.subr.mxu0 0.0
    %355 = vmatpush1.xpose.msra.mxu0 0.0
    %356 = vmatprep.subr.mxu0 0.0
    %357 = vmatpush1.xpose.msra.mxu0 0.0
    %358 = vmatprep.subr.mxu0 0.0
    %359 = vmatpush1.xpose.msra.mxu0 0.0
    %360 = vmatprep.subr.mxu0 0.0
    %361 = vmatpush1.xpose.msra.mxu0 0.0
    %362 = vmatprep.subr.mxu0 0.0
    %363 = vmatpush1.xpose.msra.mxu0 0.0
    %364 = vmatprep.subr.mxu0 0.0
    %365 = vmatpush1.xpose.msra.mxu0 0.0
    %366 = vmatprep.subr.mxu0 0.0
    %367 = vmatpush1.xpose.msra.mxu0 0.0
    %368 = vmatprep.subr.mxu0 0.0
    %369 = vmatpush1.xpose.msra.mxu0 0.0
    %370 = vmatprep.subr.mxu0 0.0
    %371 = vmatpush1.xpose.msra.mxu0 0.0
    %372 = vmatprep.subr.mxu0 0.0
    %373 = vmatpush1.xpose.msra.mxu0 0.0
    %374 = vmatprep.subr.mxu0 0.0
    %375 = vmatpush1.xpose.msra.mxu0 0.0
    %376 = vmatprep.subr.mxu0 0.0
    %377 = vmatpush1.xpose.msra.mxu0 0.0
    %378 = vmatprep.subr.mxu0 0.0
    %379 = vmatpush1.xpose.msra.mxu0 0.0
    %380 = vmatprep.subr.mxu0 0.0
    %381 = vmatpush1.xpose.msra.mxu0 0.0
    %382 = vmatprep.subr.mxu0 0.0
    %383 = vmatpush1.xpose.msra.mxu0 0.0
    %384 = vmatprep.mubr.f32.mxu0 0.0
    %385 = vmatmul.mubr.f32.gmra.mrb[0].mxu0 %v109
    %v386 = vpop.f32.mrb[0].mxu0
    %v387 = vadd.f32 %v264, %v386
    %v388 = vpop.f32.mrb[0].mxu0
    %389 = vmatprep.mubr.f32.mxu0 0.0
    %390 = vmatmul.mubr.f32.gmra.mrb[0].mxu0 %v112
    %v391 = vpop.f32.mrb[0].mxu0
    %v392 = vadd.f32 %v269, %v391
    %v393 = vpop.f32.mrb[0].mxu0
    %394 = vdwg.mxu0
    %v395 = vld [vmem:[#allocation7] sm:$0x1]
    %v397 = vlaneseq
    %v398 = vshrl.u32 %v397, 7
    %v399 = vsub.s32 0, %v398
    %v400 = vrot.slane %v395, %v399
    %v402 = vadd.f32 %v387, %v400
    %v403 = vadd.f32 %v392, %v400
    %404 = vst [vmem:[#allocation11] sm:$0xff] %v402
    %405 = vst [vmem:[#allocation11 + $0x8] sm:$0xff] %v403
    // Predicated region
    $region42: #{tpu_custom_call.1} parent=1 // pred_check
      _
    $region43: #{tpu_custom_call.1} parent=1 // pred_check_branch
      %407 = sbr.rel (0) target = $region45
    $region44: #{tpu_custom_call.1} parent=1 // pred_region
      %s409 = ssub.s32 256, 256
      %410 = vsyncadd [#allocation4], %s409
      %s411 = sshll.u32 [#allocation11], 4
      %s412 = int_to_ptr.vmem [resolvable:$true] %s411
      %417 = dma.vmem_to_hbm [thread:$0]  %s412, 256, %s5, [#allocation4], 128, 128, 8
    $region45: #{tpu_custom_call.1} parent=1 // pred_fallthru
      _
    // Predicated region
    $region46: #{tpu_custom_call.1} parent=1 // pred_check
      _
    $region47: #{tpu_custom_call.1} parent=1 // pred_check_branch
      %419 = sbr.rel (0) target = $region49
    $region48: #{tpu_custom_call.1} parent=1 // pred_region
      %420 = dma.done [#allocation4], 256
    $region49: #{tpu_custom_call.1} parent=1 // pred_fallthru
      _
    %421 = vsyncpa [#allocation3], 1
    %422 = vsyncpa [#allocation6], 1
    %423 = vsyncpa [#allocation9], 1
    %424 = vsyncpa [#allocation4], 1

</llo_original>
